<compile_context>
chip_gen: v7x
topology: tpu7x:2x2x1
jax: 0.10.0
libtpu: 0.0.40
codegen_flags: <defaults>
</compile_context>

<pallas_src>
import functools

import jax
import jax.numpy as jnp
from jax.experimental import pallas as pl
from jax.experimental.pallas import tpu as pltpu

EPS = 1e-10
LANE = 128
SUBLANE = 8


def _round_up(n, m):
    return (n + m - 1) // m * m


# ---------------------------------------------------------------------------
# Kernel
# ---------------------------------------------------------------------------
def _nalu_kernel(x_ref, wag_ref, w2_ref, o_ref, *, d_out_p):
    x = x_ref[...].astype(jnp.float32)
    mm_dtype = wag_ref.dtype  # bf16 (default) or f32

    # Fused MXU pass: [a | gate_logits] = x @ [w1 | G]  (shared LHS).
    s = jnp.dot(x.astype(mm_dtype), wag_ref[...],
                preferred_element_type=jnp.float32)
    a = s[:, :d_out_p]
    # sigmoid(z) == 0.5 * tanh(0.5 * z) + 0.5 : single EUP push per element.
    g = 0.5 * jnp.tanh(0.5 * s[:, d_out_p:]) + 0.5

    # Multiplicative path. log/exp stay in f32; only the MXU operands narrow.
    log_x = jnp.log(jnp.abs(x) + EPS)
    m = jnp.exp(jnp.dot(log_x.astype(mm_dtype), w2_ref[...],
                        preferred_element_type=jnp.float32))

    # a*g + (1-g)*m == g*(a - m) + m : one fewer VALU multiply per element.
    o_ref[...] = (g * (a - m) + m).astype(o_ref.dtype)


# ---------------------------------------------------------------------------
# One-time weight pre-pass (run once per parameter update, not per forward).
# ---------------------------------------------------------------------------
def prepare_nalu_weights(W1_hat, M1_hat, W2_hat, M2_hat, G,
                         *, matmul_dtype=jnp.bfloat16):
    """Builds the fused, padded, MXU-ready weight matrices.

    Returns:
      wag: (D_in, 2*d_out_p)  = [tanh(W1)*sig(M1) | G] transposed & padded.
      w2p: (D_in, d_out_p)    = tanh(W2)*sig(M2) transposed & padded.
    with d_out_p = round_up(D_out, 128) so output stores are lane-dense.
    """
    d_out = G.shape[0]
    w1 = (jnp.tanh(W1_hat) * jax.nn.sigmoid(M1_hat)).T
    w2 = (jnp.tanh(W2_hat) * jax.nn.sigmoid(M2_hat)).T
    gw = G.T

    d_out_p = _round_up(d_out, LANE)
    pad_n = d_out_p - d_out
    if pad_n:
        w1 = jnp.pad(w1, ((0, 0), (0, pad_n)))
        gw = jnp.pad(gw, ((0, 0), (0, pad_n)))
        w2 = jnp.pad(w2, ((0, 0), (0, pad_n)))

    wag = jnp.concatenate([w1, gw], axis=1).astype(matmul_dtype)
    w2p = w2.astype(matmul_dtype)
    return wag, w2p


# ---------------------------------------------------------------------------
# Batch-tile selection (adaptive to a VMEM budget, v7x 2-TC aware).
# ---------------------------------------------------------------------------
def _pick_block_b(B, D_in, d_out_p, *, x_bytes, w_bytes,
                  max_block_b=2048, vmem_budget_bytes=24 * 1024 * 1024):
    # Resident weights (conservatively assume default double-buffering).
    weight_bytes = 2 * (D_in * 3 * d_out_p) * w_bytes
    budget = max(vmem_budget_bytes - weight_bytes, 1 << 20)
    # Per batch row: double-buffered x tile + double-buffered f32 out tile.
    per_row = 2 * (D_in * x_bytes + d_out_p * 4)
    tb = min(max_block_b, budget // per_row, _round_up(B, SUBLANE))
    # Keep >= 2 grid steps when the batch allows it, so ("parallel",) can
    # shard across both TensorCores on v7x (no-op on single-TC v5e/v6e).
    if B > SUBLANE:
        tb = min(tb, _round_up(pl.cdiv(B, 2), SUBLANE))
    tb = max(SUBLANE, (tb // SUBLANE) * SUBLANE)
    return int(tb)


# ---------------------------------------------------------------------------
# Forward pass
# ---------------------------------------------------------------------------
def nalu_forward(x, wag, w2p, d_out, *, max_block_b=2048):
    """x: (B, D_in) f32; wag/w2p from prepare_nalu_weights; d_out = output dim."""
    B, D_in = x.shape
    d_out_p = w2p.shape[1]
    assert wag.shape == (D_in, 2 * d_out_p)
    assert w2p.shape == (D_in, d_out_p)

    x_bytes = jnp.dtype(x.dtype).itemsize
    w_bytes = jnp.dtype(wag.dtype).itemsize
    tb = _pick_block_b(B, D_in, d_out_p, x_bytes=x_bytes, w_bytes=w_bytes,
                       max_block_b=max_block_b)
    grid_b = pl.cdiv(B, tb)  # no batch padding: Pallas clips the last block

    # Explicit scoped-VMEM limit: above v5e's 16 MiB default, but within
    # v7x's 64 MiB physical VMEM.
    weight_vmem = 2 * (wag.size + w2p.size) * w_bytes
    need = weight_vmem + 2 * tb * (D_in * x_bytes + d_out_p * 4) + (4 << 20)
    vmem_limit = int(min(max(need, 32 << 20), 48 << 20))

    kernel = functools.partial(_nalu_kernel, d_out_p=d_out_p)

    out_p = pl.pallas_call(
        kernel,
        out_shape=jax.ShapeDtypeStruct((B, d_out_p), x.dtype),
        grid_spec=pltpu.PrefetchScalarGridSpec(
            num_scalar_prefetch=0,
            grid=(grid_b,),
            in_specs=[
                pl.BlockSpec((tb, D_in), lambda i: (i, 0)),            # x tile
                pl.BlockSpec((D_in, 2 * d_out_p), lambda i: (0, 0)),   # [w1|G], resident
                pl.BlockSpec((D_in, d_out_p), lambda i: (0, 0)),       # w2, resident
            ],
            out_specs=pl.BlockSpec((tb, d_out_p), lambda i: (i, 0)),
        ),
        compiler_params=pltpu.CompilerParams(
            dimension_semantics=("parallel",),
            vmem_limit_bytes=vmem_limit,
        ),
    )(x, wag, w2p)

    return out_p if d_out == d_out_p else out_p[:, :d_out]


def nalu_cell_forward(x, W1_hat, M1_hat, W2_hat, M2_hat, G,
                      *, matmul_dtype=jnp.bfloat16):
    """Convenience wrapper: weight pre-pass + kernel call."""
    wag, w2p = prepare_nalu_weights(W1_hat, M1_hat, W2_hat, M2_hat, G,
                                    matmul_dtype=matmul_dtype)
    return nalu_forward(x, wag, w2p, G.shape[0])


# ---------------------------------------------------------------------------
# Reference & test harness
# ---------------------------------------------------------------------------
def xavier_uniform(key, shape):
    fan_out, fan_in = shape
    bound = (6.0 / (fan_in + fan_out)) ** 0.5
    return jax.random.uniform(key, shape, jnp.float32, -bound, bound)


def nalu_reference(x, W1_hat, M1_hat, W2_hat, M2_hat, G):
    w1 = jnp.tanh(W1_hat) * jax.nn.sigmoid(M1_hat)
    w2 = jnp.tanh(W2_hat) * jax.nn.sigmoid(M2_hat)
    a = x @ w1.T
    g = jax.nn.sigmoid(x @ G.T)
    m = jnp.exp(jnp.log(jnp.abs(x) + EPS) @ w2.T)
    return a * g + (1 - g) * m


if __name__ == "__main__":
    B, D_in, D_out = 8, 32, 16

    key = jax.random.PRNGKey(0)
    k_x, k_g, k_w1, k_m1, k_w2, k_m2 = jax.random.split(key, 6)

    x = jax.random.normal(k_x, (B, D_in), jnp.float32)

    # Parameters (deterministic xavier-uniform init, PyTorch shapes (D_out, D_in)).
    G = xavier_uniform(k_g, (D_out, D_in))
    W1_hat = xavier_uniform(k_w1, (D_out, D_in))
    M1_hat = xavier_uniform(k_m1, (D_out, D_in))
    W2_hat = xavier_uniform(k_w2, (D_out, D_in))
    M2_hat = xavier_uniform(k_m2, (D_out, D_in))

    ref = nalu_reference(x, W1_hat, M1_hat, W2_hat, M2_hat, G)

    # 1) Strict structural check: f32 MXU operands, must match the reference.
    out_f32 = jax.block_until_ready(
        nalu_cell_forward(x, W1_hat, M1_hat, W2_hat, M2_hat, G,
                          matmul_dtype=jnp.float32))
    assert out_f32.shape == (B, D_out)
    assert jnp.allclose(out_f32, ref, atol=1e-5, rtol=1e-5), "f32 mismatch"

    # 2) Default fast path: bf16 MXU operands, f32 accumulation/elementwise.
    #    Looser tolerance accounts for bf16 rounding amplified by exp().
    out_bf16 = jax.block_until_ready(
        nalu_cell_forward(x, W1_hat, M1_hat, W2_hat, M2_hat, G))
    assert out_bf16.shape == (B, D_out)
    assert jnp.allclose(out_bf16, ref, atol=1e-1, rtol=1e-1), "bf16 mismatch"

    print("KERNEL_OK")
</pallas_src>

<mosaic_0001>
module attributes {stable_mosaic.version = 11 : i64} {
  func.func @_nalu_kernel(%arg0: i32, %arg1: memref<8x32xf32, #tpu.memory_space<vmem>>, %arg2: memref<32x256xf32, #tpu.memory_space<vmem>>, %arg3: memref<32x128xf32, #tpu.memory_space<vmem>>, %arg4: memref<8x128xf32, #tpu.memory_space<vmem>>) attributes {dimension_semantics = [#tpu.dimension_semantics<parallel>], iteration_bounds = array<i64: 1>, scalar_prefetch = 0 : i64, scratch_operands = 0 : i64, tpu.core_type = #tpu.core_type<tc>, window_params = [{transform_indices = @transform_0, window_bounds = array<i64: 8, 32>}, {pipeline_mode = #tpu.pipeline_mode<synchronous>, transform_indices = @transform_1, window_bounds = array<i64: 32, 256>}, {pipeline_mode = #tpu.pipeline_mode<synchronous>, transform_indices = @transform_2, window_bounds = array<i64: 32, 128>}, {transform_indices = @transform_3, window_bounds = array<i64: 8, 128>}]} {
    %c0 = arith.constant 0 : index
    %c0_0 = arith.constant 0 : index
    %0 = vector.load %arg1[%c0, %c0_0] : memref<8x32xf32, #tpu.memory_space<vmem>>, vector<8x32xf32>
    %c0_1 = arith.constant 0 : index
    %c0_2 = arith.constant 0 : index
    %1 = vector.load %arg2[%c0_1, %c0_2] : memref<32x256xf32, #tpu.memory_space<vmem>>, vector<32x256xf32>
    %cst = arith.constant dense<0.000000e+00> : vector<8x256xf32>
    %2 = tpu.matmul %0, %1, %cst {dimension_numbers = #tpu.dot_dimension_numbers<[1], [0], [0], [1], [0, 0, 1, 1], [], []>} : vector<8x32xf32>, vector<32x256xf32>, vector<8x256xf32> -> vector<8x256xf32>
    %3 = vector.extract_strided_slice %2 {offsets = [0, 0], sizes = [8, 128], strides = [1, 1]} : vector<8x256xf32> to vector<8x128xf32>
    %4 = vector.extract_strided_slice %2 {offsets = [0, 128], sizes = [8, 128], strides = [1, 1]} : vector<8x256xf32> to vector<8x128xf32>
    %cst_3 = arith.constant 5.000000e-01 : f32
    %5 = vector.broadcast %cst_3 : f32 to vector<8x128xf32>
    %6 = arith.mulf %5, %4 : vector<8x128xf32>
    %7 = math.tanh %6 : vector<8x128xf32>
    %cst_4 = arith.constant 5.000000e-01 : f32
    %8 = vector.broadcast %cst_4 : f32 to vector<8x128xf32>
    %9 = arith.mulf %8, %7 : vector<8x128xf32>
    %cst_5 = arith.constant 5.000000e-01 : f32
    %10 = vector.broadcast %cst_5 : f32 to vector<8x128xf32>
    %11 = arith.addf %9, %10 : vector<8x128xf32>
    %12 = math.absf %0 : vector<8x32xf32>
    %cst_6 = arith.constant 1.000000e-10 : f32
    %13 = vector.broadcast %cst_6 : f32 to vector<8x32xf32>
    %14 = arith.addf %12, %13 : vector<8x32xf32>
    %15 = math.log %14 : vector<8x32xf32>
    %c0_7 = arith.constant 0 : index
    %c0_8 = arith.constant 0 : index
    %16 = vector.load %arg3[%c0_7, %c0_8] : memref<32x128xf32, #tpu.memory_space<vmem>>, vector<32x128xf32>
    %cst_9 = arith.constant dense<0.000000e+00> : vector<8x128xf32>
    %17 = tpu.matmul %15, %16, %cst_9 {dimension_numbers = #tpu.dot_dimension_numbers<[1], [0], [0], [1], [0, 0, 1, 1], [], []>} : vector<8x32xf32>, vector<32x128xf32>, vector<8x128xf32> -> vector<8x128xf32>
    %18 = math.exp %17 : vector<8x128xf32>
    %19 = arith.subf %3, %18 : vector<8x128xf32>
    %20 = arith.mulf %11, %19 : vector<8x128xf32>
    %21 = arith.addf %20, %18 : vector<8x128xf32>
    %c0_10 = arith.constant 0 : index
    %c0_11 = arith.constant 0 : index
    %22 = vector.load %arg4[%c0_10, %c0_11] : memref<8x128xf32, #tpu.memory_space<vmem>>, vector<8x128xf32>
    tpu.vector_store %arg4[%c0_10, %c0_11], %21 {strides = array<i32>} : memref<8x128xf32, #tpu.memory_space<vmem>>, vector<8x128xf32>,
    return
  }
  func.func @transform_0(%arg0: i32) -> (i32, i32) {
    %c0_i32 = arith.constant 0 : i32
    %c0_i32_0 = arith.constant 0 : i32
    return %arg0, %c0_i32 : i32, i32
  }
  func.func @transform_1(%arg0: i32) -> (i32, i32) {
    %c0_i32 = arith.constant 0 : i32
    %c0_i32_0 = arith.constant 0 : i32
    %c0_i32_1 = arith.constant 0 : i32
    return %c0_i32, %c0_i32_0 : i32, i32
  }
  func.func @transform_2(%arg0: i32) -> (i32, i32) {
    %c0_i32 = arith.constant 0 : i32
    %c0_i32_0 = arith.constant 0 : i32
    %c0_i32_1 = arith.constant 0 : i32
    return %c0_i32, %c0_i32_0 : i32, i32
  }
  func.func @transform_3(%arg0: i32) -> (i32, i32) {
    %c0_i32 = arith.constant 0 : i32
    %c0_i32_0 = arith.constant 0 : i32
    return %arg0, %c0_i32 : i32, i32
  }
}

</mosaic_0001>

<llo_original>
// kernel: tpu_custom_call.1
$region0: #{tpu_custom_call.1}
  #allocation0 [shape = 'u32[]', space=smem, size = 0x4, offset = 0x4, fixed_abs, tag = 'smem constant byte address 0x4 - core index']
  #allocation1 [shape = 'u32[144,128]{1,0:T(1,128)}', space=vmem, size = 0x12000, scoped, tag = 'internal scratch']
  %s0 = inlined_call_operand.hbm [shape: f32[8,32], index: 0, kind: input, shape index: {}]
  %s1 = inlined_call_operand.hbm [shape: f32[32,256], index: 1, kind: input, shape index: {}]
  %s2 = inlined_call_operand.hbm [shape: f32[32,128], index: 2, kind: input, shape index: {}]
  %s3 = inlined_call_operand.hbm [shape: f32[8,128], index: 3, kind: output, shape index: {}]
  %s4 = sld [smem:[#allocation0]]
  $region34: #{tpu_custom_call.1} parent=0
    _
  %s6 = ssub.s32 1, %s4
  %s7 = scalar_select 0, %s6, %s4
  $region1: #{tpu_custom_call.1} parent=0
    #allocation2 [shape = 'u8[4096]{0}', space=vmem, size = 0x1000, scoped, tag = 'input window, operand 0, single buffered']
    #allocation3 [shape = 's32[1]{0}', space=sflag, size = 0x4, scoped, tag = 'scoped memory for tpu_custom_call.1']
    #allocation4 [shape = 's32[1]{0}', space=sflag, size = 0x4, scoped, tag = 'scoped memory for tpu_custom_call.1']
    #allocation5 [shape = 'u8[32768]{0}', space=vmem, size = 0x8000, scoped, tag = 'input window, operand 1, single buffered']
    #allocation6 [shape = 's32[1]{0}', space=sflag, size = 0x4, scoped, tag = 'scoped memory for tpu_custom_call.1']
    #allocation7 [shape = 'u8[16384]{0}', space=vmem, size = 0x4000, scoped, tag = 'input window, operand 2, single buffered']
    #allocation8 [shape = 'u8[4096]{0}', space=vmem, size = 0x1000, scoped, tag = 'output window, operand 0, single buffered']
    %8 = vsyncpa [#allocation3], 0
    %9 = vsyncpa [#allocation6], 0
    %10 = vsyncpa [#allocation4], 0
    // Predicated region
    $region2: #{tpu_custom_call.1} parent=1 // pred_check
      _
    $region3: #{tpu_custom_call.1} parent=1 // pred_check_branch
      %12 = sbr.rel (0) target = $region5
    $region4: #{tpu_custom_call.1} parent=1 // pred_region
      %s14 = ssub.s32 128, 128
      %15 = vsyncadd [#allocation3], %s14
      %s17 = sshll.u32 [#allocation2], 4
      %s18 = int_to_ptr.vmem [resolvable:$true] %s17
      %20 = dma.hbm_to_vmem [thread:$0]  %s0, 128, %s18, [#allocation3]
    $region5: #{tpu_custom_call.1} parent=1 // pred_fallthru
      _
    // Predicated region
    $region6: #{tpu_custom_call.1} parent=1 // pred_check
      _
    $region7: #{tpu_custom_call.1} parent=1 // pred_check_branch
      %22 = sbr.rel (0) target = $region9
    $region8: #{tpu_custom_call.1} parent=1 // pred_region
      %s24 = ssub.s32 1024, 1024
      %25 = vsyncadd [#allocation6], %s24
      %s26 = sshll.u32 [#allocation5], 4
      %s27 = int_to_ptr.vmem [resolvable:$true] %s26
      %32 = dma.hbm_to_vmem [thread:$0]  %s1, 1024, %s27, [#allocation6], 256, 256, 16
    $region9: #{tpu_custom_call.1} parent=1 // pred_fallthru
      _
    // Predicated region
    $region10: #{tpu_custom_call.1} parent=1 // pred_check
      _
    $region11: #{tpu_custom_call.1} parent=1 // pred_check_branch
      %34 = sbr.rel (0) target = $region13
    $region12: #{tpu_custom_call.1} parent=1 // pred_region
      %s36 = ssub.s32 512, 512
      %37 = vsyncadd [#allocation6], %s36
      %s38 = sshll.u32 [#allocation7], 4
      %s39 = int_to_ptr.vmem [resolvable:$true] %s38
      %44 = dma.hbm_to_vmem [thread:$0]  %s2, 512, %s39, [#allocation6], 128, 128, 8
    $region13: #{tpu_custom_call.1} parent=1 // pred_fallthru
      _
    // Predicated region
    $region14: #{tpu_custom_call.1} parent=1 // pred_check
      _
    $region15: #{tpu_custom_call.1} parent=1 // pred_check_branch
      %46 = sbr.rel (0) target = $region17
    $region16: #{tpu_custom_call.1} parent=1 // pred_region
      %47 = dma.done [#allocation3], 128
    $region17: #{tpu_custom_call.1} parent=1 // pred_fallthru
      _
    // Predicated region
    $region18: #{tpu_custom_call.1} parent=1 // pred_check
      _
    $region19: #{tpu_custom_call.1} parent=1 // pred_check_branch
      %49 = sbr.rel (0) target = $region21
    $region20: #{tpu_custom_call.1} parent=1 // pred_region
      %50 = dma.done [#allocation6], 1024
    $region21: #{tpu_custom_call.1} parent=1 // pred_fallthru
      _
    // Predicated region
    $region22: #{tpu_custom_call.1} parent=1 // pred_check
      _
    $region23: #{tpu_custom_call.1} parent=1 // pred_check_branch
      %52 = sbr.rel (0) target = $region25
    $region24: #{tpu_custom_call.1} parent=1 // pred_region
      %53 = dma.done [#allocation6], 512
    $region25: #{tpu_custom_call.1} parent=1 // pred_fallthru
      _
    %v54 = vld [vmem:[#allocation2] sm:$0xff]
    %v55 = vld [vmem:[#allocation5] sm:$0xff]
    %v56 = vld [vmem:[#allocation5 + $0x8] sm:$0xff]
    %v57 = vld [vmem:[#allocation5 + $0x10] sm:$0xff]
    %v58 = vld [vmem:[#allocation5 + $0x18] sm:$0xff]
    %v59 = vld [vmem:[#allocation5 + $0x20] sm:$0xff]
    %v60 = vld [vmem:[#allocation5 + $0x28] sm:$0xff]
    %v61 = vld [vmem:[#allocation5 + $0x30] sm:$0xff]
    %v62 = vld [vmem:[#allocation5 + $0x38] sm:$0xff]
    %vm63 = vcmask 261120
    %v65 = vsel %vm63, %v54, 0
    %67 = vmatprep.subr.mxu0 %v56
    %68 = vmatpush1.msra.mxu0 %v55
    %69 = vmatprep.subr.mxu0 %v58
    %70 = vmatpush1.msra.mxu0 %v57
    %71 = vmatprep.subr.mxu0 %v60
    %72 = vmatpush1.msra.mxu0 %v59
    %73 = vmatprep.subr.mxu0 %v62
    %74 = vmatpush1.msra.mxu0 %v61
    %75 = vmatprep.subr.mxu0 0.0
    %76 = vmatpush1.msra.mxu0 0.0
    %77 = vmatprep.subr.mxu0 0.0
    %78 = vmatpush1.msra.mxu0 0.0
    %79 = vmatprep.subr.mxu0 0.0
    %80 = vmatpush1.msra.mxu0 0.0
    %81 = vmatprep.subr.mxu0 0.0
    %82 = vmatpush1.msra.mxu0 0.0
    %83 = vmatprep.subr.mxu0 0.0
    %84 = vmatpush1.msra.mxu0 0.0
    %85 = vmatprep.subr.mxu0 0.0
    %86 = vmatpush1.msra.mxu0 0.0
    %87 = vmatprep.subr.mxu0 0.0
    %88 = vmatpush1.msra.mxu0 0.0
    %89 = vmatprep.subr.mxu0 0.0
    %90 = vmatpush1.msra.mxu0 0.0
    %91 = vmatprep.subr.mxu0 0.0
    %92 = vmatpush1.msra.mxu0 0.0
    %93 = vmatprep.subr.mxu0 0.0
    %94 = vmatpush1.msra.mxu0 0.0
    %95 = vmatprep.subr.mxu0 0.0
    %96 = vmatpush1.msra.mxu0 0.0
    %97 = vmatprep.subr.mxu0 0.0
    %98 = vmatpush1.msra.mxu0 0.0
    %99 = vmatprep.subr.mxu0 0.0
    %100 = vmatpush1.msra.mxu0 0.0
    %101 = vmatprep.subr.mxu0 0.0
    %102 = vmatpush1.msra.mxu0 0.0
    %103 = vmatprep.subr.mxu0 0.0
    %104 = vmatpush1.msra.mxu0 0.0
    %105 = vmatprep.subr.mxu0 0.0
    %106 = vmatpush1.msra.mxu0 0.0
    %107 = vmatprep.subr.mxu0 0.0
    %108 = vmatpush1.msra.mxu0 0.0
    %109 = vmatprep.subr.mxu0 0.0
    %110 = vmatpush1.msra.mxu0 0.0
    %111 = vmatprep.subr.mxu0 0.0
    %112 = vmatpush1.msra.mxu0 0.0
    %113 = vmatprep.subr.mxu0 0.0
    %114 = vmatpush1.msra.mxu0 0.0
    %115 = vmatprep.subr.mxu0 0.0
    %116 = vmatpush1.msra.mxu0 0.0
    %117 = vmatprep.subr.mxu0 0.0
    %118 = vmatpush1.msra.mxu0 0.0
    %119 = vmatprep.subr.mxu0 0.0
    %120 = vmatpush1.msra.mxu0 0.0
    %121 = vmatprep.subr.mxu0 0.0
    %122 = vmatpush1.msra.mxu0 0.0
    %123 = vmatprep.subr.mxu0 0.0
    %124 = vmatpush1.msra.mxu0 0.0
    %125 = vmatprep.subr.mxu0 0.0
    %126 = vmatpush1.msra.mxu0 0.0
    %127 = vmatprep.subr.mxu0 0.0
    %128 = vmatpush1.msra.mxu0 0.0
    %129 = vmatprep.subr.mxu0 0.0
    %130 = vmatpush1.msra.mxu0 0.0
    %131 = vmatprep.mubr.f32.mxu0 0.0
    %132 = vmatmul.mubr.f32.gmra.mrb[0].mxu0 %v65
    %v133 = vpop.f32.mrb[0].mxu0
    %v134 = vadd.f32 0.0, %v133
    %v135 = vpop.f32.mrb[0].mxu0
    %v136 = vadd.f32 0.0, %v135
    %137 = vdwg.mxu0
    %v138 = vmul.f32 %v136, 0.5
    %v139 = vtanh.pop %v138
    %v140 = vmul.f32 %v139, 0.5
    %v141 = vadd.f32 %v140, 0.5
    %v142 = vand.u32 2147483647, %v54
    %v143 = vadd.f32 %v142, 1e-10
    %v144 = vlog2.pop %v143
    %v145 = vmul.f32 %v144, 0.6931472
    %v146 = vld [vmem:[#allocation7] sm:$0xff]
    %v147 = vld [vmem:[#allocation7 + $0x8] sm:$0xff]
    %v148 = vld [vmem:[#allocation7 + $0x10] sm:$0xff]
    %v149 = vld [vmem:[#allocation7 + $0x18] sm:$0xff]
    %v151 = vsel %vm63, %v145, 0
    %153 = vmatprep.subr.mxu0 0.0
    %154 = vmatpush1.msra.mxu0 %v146
    %155 = vmatprep.subr.mxu0 0.0
    %156 = vmatpush1.msra.mxu0 %v147
    %157 = vmatprep.subr.mxu0 0.0
    %158 = vmatpush1.msra.mxu0 %v148
    %159 = vmatprep.subr.mxu0 0.0
    %160 = vmatpush1.msra.mxu0 %v149
    %161 = vmatprep.subr.mxu0 0.0
    %162 = vmatpush1.msra.mxu0 0.0
    %163 = vmatprep.subr.mxu0 0.0
    %164 = vmatpush1.msra.mxu0 0.0
    %165 = vmatprep.subr.mxu0 0.0
    %166 = vmatpush1.msra.mxu0 0.0
    %167 = vmatprep.subr.mxu0 0.0
    %168 = vmatpush1.msra.mxu0 0.0
    %169 = vmatprep.subr.mxu0 0.0
    %170 = vmatpush1.msra.mxu0 0.0
    %171 = vmatprep.subr.mxu0 0.0
    %172 = vmatpush1.msra.mxu0 0.0
    %173 = vmatprep.subr.mxu0 0.0
    %174 = vmatpush1.msra.mxu0 0.0
    %175 = vmatprep.subr.mxu0 0.0
    %176 = vmatpush1.msra.mxu0 0.0
    %177 = vmatprep.subr.mxu0 0.0
    %178 = vmatpush1.msra.mxu0 0.0
    %179 = vmatprep.subr.mxu0 0.0
    %180 = vmatpush1.msra.mxu0 0.0
    %181 = vmatprep.subr.mxu0 0.0
    %182 = vmatpush1.msra.mxu0 0.0
    %183 = vmatprep.subr.mxu0 0.0
    %184 = vmatpush1.msra.mxu0 0.0
    %185 = vmatprep.subr.mxu0 0.0
    %186 = vmatpush1.msra.mxu0 0.0
    %187 = vmatprep.subr.mxu0 0.0
    %188 = vmatpush1.msra.mxu0 0.0
    %189 = vmatprep.subr.mxu0 0.0
    %190 = vmatpush1.msra.mxu0 0.0
    %191 = vmatprep.subr.mxu0 0.0
    %192 = vmatpush1.msra.mxu0 0.0
    %193 = vmatprep.subr.mxu0 0.0
    %194 = vmatpush1.msra.mxu0 0.0
    %195 = vmatprep.subr.mxu0 0.0
    %196 = vmatpush1.msra.mxu0 0.0
    %197 = vmatprep.subr.mxu0 0.0
    %198 = vmatpush1.msra.mxu0 0.0
    %199 = vmatprep.subr.mxu0 0.0
    %200 = vmatpush1.msra.mxu0 0.0
    %201 = vmatprep.subr.mxu0 0.0
    %202 = vmatpush1.msra.mxu0 0.0
    %203 = vmatprep.subr.mxu0 0.0
    %204 = vmatpush1.msra.mxu0 0.0
    %205 = vmatprep.subr.mxu0 0.0
    %206 = vmatpush1.msra.mxu0 0.0
    %207 = vmatprep.subr.mxu0 0.0
    %208 = vmatpush1.msra.mxu0 0.0
    %209 = vmatprep.subr.mxu0 0.0
    %210 = vmatpush1.msra.mxu0 0.0
    %211 = vmatprep.subr.mxu0 0.0
    %212 = vmatpush1.msra.mxu0 0.0
    %213 = vmatprep.subr.mxu0 0.0
    %214 = vmatpush1.msra.mxu0 0.0
    %215 = vmatprep.subr.mxu0 0.0
    %216 = vmatpush1.msra.mxu0 0.0
    %217 = vmatprep.mubr.f32.mxu0 0.0
    %218 = vmatmul.mubr.f32.gmra.mrb[0].mxu0 %v151
    %v219 = vpop.f32.mrb[0].mxu0
    %v220 = vadd.f32 0.0, %v219
    %v221 = vpop.f32.mrb[0].mxu0
    %222 = vdwg.mxu0
    %v223 = vmul.f32 %v220, 1.442695
    %v224 = vpow.pop %v223
    %v225 = vsub.f32 %v134, %v224
    %v226 = vmul.f32 %v141, %v225
    %v227 = vadd.f32 %v226, %v224
    %228 = vst [vmem:[#allocation8] sm:$0xff] %v227
    // Predicated region
    $region26: #{tpu_custom_call.1} parent=1 // pred_check
      _
    $region27: #{tpu_custom_call.1} parent=1 // pred_check_branch
      %230 = sbr.rel (0) target = $region29
    $region28: #{tpu_custom_call.1} parent=1 // pred_region
      %s232 = ssub.s32 128, 128
      %233 = vsyncadd [#allocation4], %s232
      %s235 = sshll.u32 [#allocation8], 4
      %s236 = int_to_ptr.vmem [resolvable:$true] %s235
      %238 = dma.vmem_to_hbm [thread:$0]  %s236, 128, %s3, [#allocation4]
    $region29: #{tpu_custom_call.1} parent=1 // pred_fallthru
      _
    // Predicated region
    $region30: #{tpu_custom_call.1} parent=1 // pred_check
      _
    $region31: #{tpu_custom_call.1} parent=1 // pred_check_branch
      %240 = sbr.rel (0) target = $region33
    $region32: #{tpu_custom_call.1} parent=1 // pred_region
      %241 = dma.done [#allocation4], 128
    $region33: #{tpu_custom_call.1} parent=1 // pred_fallthru
      _
    %242 = vsyncpa [#allocation3], 1
    %243 = vsyncpa [#allocation6], 1
    %244 = vsyncpa [#allocation4], 1

</llo_original>
